<compile_context>
chip_gen: v7x
topology: tpu7x:2x2x1
jax: 0.10.0
libtpu: 0.0.40
codegen_flags: <defaults>
</compile_context>

<pallas_src>
import functools

import jax
import jax.numpy as jnp
import numpy as np
from jax.experimental import pallas as pl
from jax.experimental.pallas import tpu as pltpu


def _transr_edge_kernel(head_ref, rel_ref, tail_ref, out_ref, *, gamma):
    # Upcast so bf16-stored embeddings still score in f32.
    head = head_ref[...].astype(jnp.float32)
    rel = rel_ref[...].astype(jnp.float32)
    tail = tail_ref[...].astype(jnp.float32)

    # score = gamma - ||h + r - t||_1  (VPU elementwise + lane-axis reduction)
    diff = jnp.abs(head + rel - tail)
    out_ref[...] = gamma - jnp.sum(diff, axis=-1, keepdims=True)


def _round_up(x, m):
    return ((x + m - 1) // m) * m


def transr_score(head_emb, rel_emb, tail_emb, *, gamma, tile_e=None):
    """Per-edge TransR score: gamma - ||head + rel - tail||_1 -> shape (E,)."""
    E, D = head_emb.shape
    assert rel_emb.shape == (E, D) and tail_emb.shape == (E, D)

    if tile_e is None:
        # ~4 MiB per input buffer; 3 inputs x 2 pipeline buffers ~ 24 MiB VMEM.
        per_buf_bytes = 4 * 1024 * 1024
        tile_e = per_buf_bytes // (D * 4)
        tile_e = max(8, min(2048, tile_e))
    # Never exceed (padded) E; keep the sublane dim a multiple of 8.
    tile_e = min(tile_e, _round_up(E, 8))
    tile_e = max(8, (tile_e // 8) * 8)

    # cdiv grid + zero padding instead of requiring E % tile_e == 0.
    num_tiles = pl.cdiv(E, tile_e)
    E_pad = num_tiles * tile_e
    if E_pad != E:
        pad = ((0, E_pad - E), (0, 0))
        head_emb = jnp.pad(head_emb, pad)
        rel_emb = jnp.pad(rel_emb, pad)
        tail_emb = jnp.pad(tail_emb, pad)

    # Explicit VMEM budget: 3 double-buffered inputs + lane-padded output tile.
    in_bytes = 3 * 2 * tile_e * D * 4
    out_bytes = 2 * tile_e * 128 * 4
    vmem_limit = min(56 * 2**20, max(32 * 2**20, int(1.5 * (in_bytes + out_bytes))))

    kernel = functools.partial(_transr_edge_kernel, gamma=float(gamma))

    out = pl.pallas_call(
        kernel,
        out_shape=jax.ShapeDtypeStruct((E_pad, 1), jnp.float32),
        grid=(num_tiles,),
        in_specs=[
            pl.BlockSpec((tile_e, D), lambda i: (i, 0)),  # head_emb
            pl.BlockSpec((tile_e, D), lambda i: (i, 0)),  # rel_emb
            pl.BlockSpec((tile_e, D), lambda i: (i, 0)),  # tail_emb
        ],
        out_specs=pl.BlockSpec((tile_e, 1), lambda i: (i, 0)),
        compiler_params=pltpu.CompilerParams(
            dimension_semantics=("parallel",),
            vmem_limit_bytes=vmem_limit),
    )(head_emb, rel_emb, tail_emb)
    return out[:E, 0]


def transr_score_ref(head_emb, rel_emb, tail_emb, *, gamma):
    """Pure-JAX reference matching TransRScore.edge_func exactly."""
    return gamma - jnp.sum(jnp.abs(head_emb + rel_emb - tail_emb), axis=-1)


if __name__ == "__main__":
    # Deterministic synthetic "graph edges".
    E = 256              # number of edges
    entity_dim = 64
    relation_dim = 128   # D seen by the kernel
    gamma = 12.0

    key = jax.random.PRNGKey(0)
    k_h, k_t, k_r, k_p, k_2 = jax.random.split(key, 5)
    head_ent = jax.random.normal(k_h, (E, entity_dim), dtype=jnp.float32)
    tail_ent = jax.random.normal(k_t, (E, entity_dim), dtype=jnp.float32)
    rel_emb = jax.random.normal(k_r, (E, relation_dim), dtype=jnp.float32)
    projection = jax.random.normal(
        k_p, (E, entity_dim, relation_dim), dtype=jnp.float32) / np.sqrt(entity_dim)

    # prepare(): project head/tail entity embeddings into relation space
    # (plain JAX batched matmul; not part of forward()).
    head_emb = jnp.einsum('ab,abc->ac', head_ent, projection)
    tail_emb = jnp.einsum('ab,abc->ac', tail_ent, projection)

    out = transr_score(head_emb, rel_emb, tail_emb, gamma=gamma)
    out = jax.block_until_ready(out)
    ref = transr_score_ref(head_emb, rel_emb, tail_emb, gamma=gamma)
    assert out.shape == (E,)
    np.testing.assert_allclose(np.asarray(out), np.asarray(ref),
                               rtol=1e-5, atol=1e-3)

    # Second check: ragged edge count (exercises the cdiv grid + padding path)
    # and a small relation_dim.
    E2, D2 = 300, 64
    k_a, k_b, k_c = jax.random.split(k_2, 3)
    h2 = jax.random.normal(k_a, (E2, D2), dtype=jnp.float32)
    r2 = jax.random.normal(k_b, (E2, D2), dtype=jnp.float32)
    t2 = jax.random.normal(k_c, (E2, D2), dtype=jnp.float32)
    out2 = jax.block_until_ready(transr_score(h2, r2, t2, gamma=gamma))
    ref2 = transr_score_ref(h2, r2, t2, gamma=gamma)
    assert out2.shape == (E2,)
    np.testing.assert_allclose(np.asarray(out2), np.asarray(ref2),
                               rtol=1e-5, atol=1e-3)

    print("KERNEL_OK")
</pallas_src>

<mosaic_0001>
module attributes {stable_mosaic.version = 11 : i64} {
  func.func @_transr_edge_kernel(%arg0: i32, %arg1: memref<256x128xf32, #tpu.memory_space<vmem>>, %arg2: memref<256x128xf32, #tpu.memory_space<vmem>>, %arg3: memref<256x128xf32, #tpu.memory_space<vmem>>, %arg4: memref<256x1xf32, #tpu.memory_space<vmem>>) attributes {dimension_semantics = [#tpu.dimension_semantics<parallel>], iteration_bounds = array<i64: 1>, scalar_prefetch = 0 : i64, scratch_operands = 0 : i64, tpu.core_type = #tpu.core_type<tc>, window_params = [{transform_indices = @transform_0, window_bounds = array<i64: 256, 128>}, {transform_indices = @transform_1, window_bounds = array<i64: 256, 128>}, {transform_indices = @transform_2, window_bounds = array<i64: 256, 128>}, {transform_indices = @transform_3, window_bounds = array<i64: 256, 1>}]} {
    %c0 = arith.constant 0 : index
    %c0_0 = arith.constant 0 : index
    %0 = vector.load %arg1[%c0, %c0_0] : memref<256x128xf32, #tpu.memory_space<vmem>>, vector<256x128xf32>
    %c0_1 = arith.constant 0 : index
    %c0_2 = arith.constant 0 : index
    %1 = vector.load %arg2[%c0_1, %c0_2] : memref<256x128xf32, #tpu.memory_space<vmem>>, vector<256x128xf32>
    %c0_3 = arith.constant 0 : index
    %c0_4 = arith.constant 0 : index
    %2 = vector.load %arg3[%c0_3, %c0_4] : memref<256x128xf32, #tpu.memory_space<vmem>>, vector<256x128xf32>
    %3 = arith.addf %0, %1 : vector<256x128xf32>
    %4 = arith.subf %3, %2 : vector<256x128xf32>
    %5 = math.absf %4 : vector<256x128xf32>
    %cst = arith.constant dense<0.000000e+00> : vector<256xf32>
    %6 = vector.multi_reduction <add>, %5, %cst [1] : vector<256x128xf32> to vector<256xf32>
    %7 = vector.shape_cast %6 : vector<256xf32> to vector<256x1xf32>
    %cst_5 = arith.constant 1.200000e+01 : f32
    %8 = vector.broadcast %cst_5 : f32 to vector<256x1xf32>
    %9 = arith.subf %8, %7 : vector<256x1xf32>
    %c0_6 = arith.constant 0 : index
    %c0_7 = arith.constant 0 : index
    %10 = vector.load %arg4[%c0_6, %c0_7] : memref<256x1xf32, #tpu.memory_space<vmem>>, vector<256x1xf32>
    tpu.vector_store %arg4[%c0_6, %c0_7], %9 {strides = array<i32>} : memref<256x1xf32, #tpu.memory_space<vmem>>, vector<256x1xf32>,
    return
  }
  func.func @transform_0(%arg0: i32) -> (i32, i32) {
    %c0_i32 = arith.constant 0 : i32
    %c0_i32_0 = arith.constant 0 : i32
    return %arg0, %c0_i32 : i32, i32
  }
  func.func @transform_1(%arg0: i32) -> (i32, i32) {
    %c0_i32 = arith.constant 0 : i32
    %c0_i32_0 = arith.constant 0 : i32
    return %arg0, %c0_i32 : i32, i32
  }
  func.func @transform_2(%arg0: i32) -> (i32, i32) {
    %c0_i32 = arith.constant 0 : i32
    %c0_i32_0 = arith.constant 0 : i32
    return %arg0, %c0_i32 : i32, i32
  }
  func.func @transform_3(%arg0: i32) -> (i32, i32) {
    %c0_i32 = arith.constant 0 : i32
    %c0_i32_0 = arith.constant 0 : i32
    return %arg0, %c0_i32 : i32, i32
  }
}

</mosaic_0001>

<llo_original>
// kernel: tpu_custom_call.1
$region0: #{tpu_custom_call.1}
  #allocation0 [shape = 'u32[]', space=smem, size = 0x4, offset = 0x4, fixed_abs, tag = 'smem constant byte address 0x4 - core index']
  #allocation1 [shape = 'u32[144,128]{1,0:T(1,128)}', space=vmem, size = 0x12000, scoped, tag = 'internal scratch']
  %s0 = inlined_call_operand.hbm [shape: f32[256,128], index: 0, kind: input, shape index: {}]
  %s1 = inlined_call_operand.hbm [shape: f32[256,128], index: 1, kind: input, shape index: {}]
  %s2 = inlined_call_operand.hbm [shape: f32[256,128], index: 2, kind: input, shape index: {}]
  %s3 = inlined_call_operand.vmem [shape: f32[256,1], index: 3, kind: output, shape index: {}]
  %s4 = sld [smem:[#allocation0]]
  $region34: #{tpu_custom_call.1} parent=0
    _
  %s6 = ssub.s32 1, %s4
  %s7 = scalar_select 0, %s6, %s4
  $region1: #{tpu_custom_call.1} parent=0
    #allocation2 [shape = 'u8[131072]{0}', space=vmem, size = 0x20000, scoped, tag = 'input window, operand 0, single buffered']
    #allocation3 [shape = 's32[1]{0}', space=sflag, size = 0x4, scoped, tag = 'scoped memory for tpu_custom_call.1']
    #allocation4 [shape = 'u8[131072]{0}', space=vmem, size = 0x20000, scoped, tag = 'input window, operand 1, single buffered']
    #allocation5 [shape = 's32[1]{0}', space=sflag, size = 0x4, scoped, tag = 'scoped memory for tpu_custom_call.1']
    #allocation6 [shape = 'u8[131072]{0}', space=vmem, size = 0x20000, scoped, tag = 'input window, operand 2, single buffered']
    %8 = vsyncpa [#allocation3], 0
    %9 = vsyncpa [#allocation5], 0
    // Predicated region
    $region2: #{tpu_custom_call.1} parent=1 // pred_check
      _
    $region3: #{tpu_custom_call.1} parent=1 // pred_check_branch
      %11 = sbr.rel (0) target = $region5
    $region4: #{tpu_custom_call.1} parent=1 // pred_region
      %s13 = ssub.s32 4096, 4096
      %14 = vsyncadd [#allocation3], %s13
      %s15 = sshll.u32 [#allocation2], 4
      %s16 = int_to_ptr.vmem [resolvable:$true] %s15
      %21 = dma.hbm_to_vmem [thread:$0]  %s0, 4096, %s16, [#allocation3], 128, 128, 8
    $region5: #{tpu_custom_call.1} parent=1 // pred_fallthru
      _
    // Predicated region
    $region6: #{tpu_custom_call.1} parent=1 // pred_check
      _
    $region7: #{tpu_custom_call.1} parent=1 // pred_check_branch
      %23 = sbr.rel (0) target = $region9
    $region8: #{tpu_custom_call.1} parent=1 // pred_region
      %s25 = ssub.s32 4096, 4096
      %26 = vsyncadd [#allocation5], %s25
      %s27 = sshll.u32 [#allocation4], 4
      %s28 = int_to_ptr.vmem [resolvable:$true] %s27
      %33 = dma.hbm_to_vmem [thread:$0]  %s1, 4096, %s28, [#allocation5], 128, 128, 8
    $region9: #{tpu_custom_call.1} parent=1 // pred_fallthru
      _
    // Predicated region
    $region10: #{tpu_custom_call.1} parent=1 // pred_check
      _
    $region11: #{tpu_custom_call.1} parent=1 // pred_check_branch
      %35 = sbr.rel (0) target = $region13
    $region12: #{tpu_custom_call.1} parent=1 // pred_region
      %s37 = ssub.s32 4096, 4096
      %38 = vsyncadd [#allocation5], %s37
      %s39 = sshll.u32 [#allocation6], 4
      %s40 = int_to_ptr.vmem [resolvable:$true] %s39
      %45 = dma.hbm_to_vmem [thread:$0]  %s2, 4096, %s40, [#allocation5], 128, 128, 8
    $region13: #{tpu_custom_call.1} parent=1 // pred_fallthru
      _
    // Predicated region
    $region14: #{tpu_custom_call.1} parent=1 // pred_check
      _
    $region15: #{tpu_custom_call.1} parent=1 // pred_check_branch
      %47 = sbr.rel (0) target = $region17
    $region16: #{tpu_custom_call.1} parent=1 // pred_region
      %48 = dma.done [#allocation3], 4096
    $region17: #{tpu_custom_call.1} parent=1 // pred_fallthru
      _
    // Predicated region
    $region18: #{tpu_custom_call.1} parent=1 // pred_check
      _
    $region19: #{tpu_custom_call.1} parent=1 // pred_check_branch
      %50 = sbr.rel (0) target = $region21
    $region20: #{tpu_custom_call.1} parent=1 // pred_region
      %51 = dma.done [#allocation5], 4096
    $region21: #{tpu_custom_call.1} parent=1 // pred_fallthru
      _
    // Predicated region
    $region22: #{tpu_custom_call.1} parent=1 // pred_check
      _
    $region23: #{tpu_custom_call.1} parent=1 // pred_check_branch
      %53 = sbr.rel (0) target = $region25
    $region24: #{tpu_custom_call.1} parent=1 // pred_region
      %54 = dma.done [#allocation5], 4096
    $region25: #{tpu_custom_call.1} parent=1 // pred_fallthru
      _
    %v55 = vld [vmem:[#allocation2] sm:$0xff]
    %v56 = vld [vmem:[#allocation2 + $0x8] sm:$0xff]
    %v57 = vld [vmem:[#allocation2 + $0x10] sm:$0xff]
    %v58 = vld [vmem:[#allocation2 + $0x18] sm:$0xff]
    %v59 = vld [vmem:[#allocation2 + $0x20] sm:$0xff]
    %v60 = vld [vmem:[#allocation2 + $0x28] sm:$0xff]
    %v61 = vld [vmem:[#allocation2 + $0x30] sm:$0xff]
    %v62 = vld [vmem:[#allocation2 + $0x38] sm:$0xff]
    %v63 = vld [vmem:[#allocation2 + $0x40] sm:$0xff]
    %v64 = vld [vmem:[#allocation2 + $0x48] sm:$0xff]
    %v65 = vld [vmem:[#allocation2 + $0x50] sm:$0xff]
    %v66 = vld [vmem:[#allocation2 + $0x58] sm:$0xff]
    %v67 = vld [vmem:[#allocation2 + $0x60] sm:$0xff]
    %v68 = vld [vmem:[#allocation2 + $0x68] sm:$0xff]
    %v69 = vld [vmem:[#allocation2 + $0x70] sm:$0xff]
    %v70 = vld [vmem:[#allocation2 + $0x78] sm:$0xff]
    %v71 = vld [vmem:[#allocation2 + $0x80] sm:$0xff]
    %v72 = vld [vmem:[#allocation2 + $0x88] sm:$0xff]
    %v73 = vld [vmem:[#allocation2 + $0x90] sm:$0xff]
    %v74 = vld [vmem:[#allocation2 + $0x98] sm:$0xff]
    %v75 = vld [vmem:[#allocation2 + $0xa0] sm:$0xff]
    %v76 = vld [vmem:[#allocation2 + $0xa8] sm:$0xff]
    %v77 = vld [vmem:[#allocation2 + $0xb0] sm:$0xff]
    %v78 = vld [vmem:[#allocation2 + $0xb8] sm:$0xff]
    %v79 = vld [vmem:[#allocation2 + $0xc0] sm:$0xff]
    %v80 = vld [vmem:[#allocation2 + $0xc8] sm:$0xff]
    %v81 = vld [vmem:[#allocation2 + $0xd0] sm:$0xff]
    %v82 = vld [vmem:[#allocation2 + $0xd8] sm:$0xff]
    %v83 = vld [vmem:[#allocation2 + $0xe0] sm:$0xff]
    %v84 = vld [vmem:[#allocation2 + $0xe8] sm:$0xff]
    %v85 = vld [vmem:[#allocation2 + $0xf0] sm:$0xff]
    %v86 = vld [vmem:[#allocation2 + $0xf8] sm:$0xff]
    %v87 = vld [vmem:[#allocation4] sm:$0xff]
    %v88 = vld [vmem:[#allocation4 + $0x8] sm:$0xff]
    %v89 = vld [vmem:[#allocation4 + $0x10] sm:$0xff]
    %v90 = vld [vmem:[#allocation4 + $0x18] sm:$0xff]
    %v91 = vld [vmem:[#allocation4 + $0x20] sm:$0xff]
    %v92 = vld [vmem:[#allocation4 + $0x28] sm:$0xff]
    %v93 = vld [vmem:[#allocation4 + $0x30] sm:$0xff]
    %v94 = vld [vmem:[#allocation4 + $0x38] sm:$0xff]
    %v95 = vld [vmem:[#allocation4 + $0x40] sm:$0xff]
    %v96 = vld [vmem:[#allocation4 + $0x48] sm:$0xff]
    %v97 = vld [vmem:[#allocation4 + $0x50] sm:$0xff]
    %v98 = vld [vmem:[#allocation4 + $0x58] sm:$0xff]
    %v99 = vld [vmem:[#allocation4 + $0x60] sm:$0xff]
    %v100 = vld [vmem:[#allocation4 + $0x68] sm:$0xff]
    %v101 = vld [vmem:[#allocation4 + $0x70] sm:$0xff]
    %v102 = vld [vmem:[#allocation4 + $0x78] sm:$0xff]
    %v103 = vld [vmem:[#allocation4 + $0x80] sm:$0xff]
    %v104 = vld [vmem:[#allocation4 + $0x88] sm:$0xff]
    %v105 = vld [vmem:[#allocation4 + $0x90] sm:$0xff]
    %v106 = vld [vmem:[#allocation4 + $0x98] sm:$0xff]
    %v107 = vld [vmem:[#allocation4 + $0xa0] sm:$0xff]
    %v108 = vld [vmem:[#allocation4 + $0xa8] sm:$0xff]
    %v109 = vld [vmem:[#allocation4 + $0xb0] sm:$0xff]
    %v110 = vld [vmem:[#allocation4 + $0xb8] sm:$0xff]
    %v111 = vld [vmem:[#allocation4 + $0xc0] sm:$0xff]
    %v112 = vld [vmem:[#allocation4 + $0xc8] sm:$0xff]
    %v113 = vld [vmem:[#allocation4 + $0xd0] sm:$0xff]
    %v114 = vld [vmem:[#allocation4 + $0xd8] sm:$0xff]
    %v115 = vld [vmem:[#allocation4 + $0xe0] sm:$0xff]
    %v116 = vld [vmem:[#allocation4 + $0xe8] sm:$0xff]
    %v117 = vld [vmem:[#allocation4 + $0xf0] sm:$0xff]
    %v118 = vld [vmem:[#allocation4 + $0xf8] sm:$0xff]
    %v119 = vld [vmem:[#allocation6] sm:$0xff]
    %v120 = vld [vmem:[#allocation6 + $0x8] sm:$0xff]
    %v121 = vld [vmem:[#allocation6 + $0x10] sm:$0xff]
    %v122 = vld [vmem:[#allocation6 + $0x18] sm:$0xff]
    %v123 = vld [vmem:[#allocation6 + $0x20] sm:$0xff]
    %v124 = vld [vmem:[#allocation6 + $0x28] sm:$0xff]
    %v125 = vld [vmem:[#allocation6 + $0x30] sm:$0xff]
    %v126 = vld [vmem:[#allocation6 + $0x38] sm:$0xff]
    %v127 = vld [vmem:[#allocation6 + $0x40] sm:$0xff]
    %v128 = vld [vmem:[#allocation6 + $0x48] sm:$0xff]
    %v129 = vld [vmem:[#allocation6 + $0x50] sm:$0xff]
    %v130 = vld [vmem:[#allocation6 + $0x58] sm:$0xff]
    %v131 = vld [vmem:[#allocation6 + $0x60] sm:$0xff]
    %v132 = vld [vmem:[#allocation6 + $0x68] sm:$0xff]
    %v133 = vld [vmem:[#allocation6 + $0x70] sm:$0xff]
    %v134 = vld [vmem:[#allocation6 + $0x78] sm:$0xff]
    %v135 = vld [vmem:[#allocation6 + $0x80] sm:$0xff]
    %v136 = vld [vmem:[#allocation6 + $0x88] sm:$0xff]
    %v137 = vld [vmem:[#allocation6 + $0x90] sm:$0xff]
    %v138 = vld [vmem:[#allocation6 + $0x98] sm:$0xff]
    %v139 = vld [vmem:[#allocation6 + $0xa0] sm:$0xff]
    %v140 = vld [vmem:[#allocation6 + $0xa8] sm:$0xff]
    %v141 = vld [vmem:[#allocation6 + $0xb0] sm:$0xff]
    %v142 = vld [vmem:[#allocation6 + $0xb8] sm:$0xff]
    %v143 = vld [vmem:[#allocation6 + $0xc0] sm:$0xff]
    %v144 = vld [vmem:[#allocation6 + $0xc8] sm:$0xff]
    %v145 = vld [vmem:[#allocation6 + $0xd0] sm:$0xff]
    %v146 = vld [vmem:[#allocation6 + $0xd8] sm:$0xff]
    %v147 = vld [vmem:[#allocation6 + $0xe0] sm:$0xff]
    %v148 = vld [vmem:[#allocation6 + $0xe8] sm:$0xff]
    %v149 = vld [vmem:[#allocation6 + $0xf0] sm:$0xff]
    %v150 = vld [vmem:[#allocation6 + $0xf8] sm:$0xff]
    %v151 = vadd.f32 %v55, %v87
    %v152 = vadd.f32 %v56, %v88
    %v153 = vadd.f32 %v57, %v89
    %v154 = vadd.f32 %v58, %v90
    %v155 = vadd.f32 %v59, %v91
    %v156 = vadd.f32 %v60, %v92
    %v157 = vadd.f32 %v61, %v93
    %v158 = vadd.f32 %v62, %v94
    %v159 = vadd.f32 %v63, %v95
    %v160 = vadd.f32 %v64, %v96
    %v161 = vadd.f32 %v65, %v97
    %v162 = vadd.f32 %v66, %v98
    %v163 = vadd.f32 %v67, %v99
    %v164 = vadd.f32 %v68, %v100
    %v165 = vadd.f32 %v69, %v101
    %v166 = vadd.f32 %v70, %v102
    %v167 = vadd.f32 %v71, %v103
    %v168 = vadd.f32 %v72, %v104
    %v169 = vadd.f32 %v73, %v105
    %v170 = vadd.f32 %v74, %v106
    %v171 = vadd.f32 %v75, %v107
    %v172 = vadd.f32 %v76, %v108
    %v173 = vadd.f32 %v77, %v109
    %v174 = vadd.f32 %v78, %v110
    %v175 = vadd.f32 %v79, %v111
    %v176 = vadd.f32 %v80, %v112
    %v177 = vadd.f32 %v81, %v113
    %v178 = vadd.f32 %v82, %v114
    %v179 = vadd.f32 %v83, %v115
    %v180 = vadd.f32 %v84, %v116
    %v181 = vadd.f32 %v85, %v117
    %v182 = vadd.f32 %v86, %v118
    %v183 = vsub.f32 %v151, %v119
    %v184 = vsub.f32 %v152, %v120
    %v185 = vsub.f32 %v153, %v121
    %v186 = vsub.f32 %v154, %v122
    %v187 = vsub.f32 %v155, %v123
    %v188 = vsub.f32 %v156, %v124
    %v189 = vsub.f32 %v157, %v125
    %v190 = vsub.f32 %v158, %v126
    %v191 = vsub.f32 %v159, %v127
    %v192 = vsub.f32 %v160, %v128
    %v193 = vsub.f32 %v161, %v129
    %v194 = vsub.f32 %v162, %v130
    %v195 = vsub.f32 %v163, %v131
    %v196 = vsub.f32 %v164, %v132
    %v197 = vsub.f32 %v165, %v133
    %v198 = vsub.f32 %v166, %v134
    %v199 = vsub.f32 %v167, %v135
    %v200 = vsub.f32 %v168, %v136
    %v201 = vsub.f32 %v169, %v137
    %v202 = vsub.f32 %v170, %v138
    %v203 = vsub.f32 %v171, %v139
    %v204 = vsub.f32 %v172, %v140
    %v205 = vsub.f32 %v173, %v141
    %v206 = vsub.f32 %v174, %v142
    %v207 = vsub.f32 %v175, %v143
    %v208 = vsub.f32 %v176, %v144
    %v209 = vsub.f32 %v177, %v145
    %v210 = vsub.f32 %v178, %v146
    %v211 = vsub.f32 %v179, %v147
    %v212 = vsub.f32 %v180, %v148
    %v213 = vsub.f32 %v181, %v149
    %v214 = vsub.f32 %v182, %v150
    %v215 = vand.u32 2147483647, %v183
    %v216 = vand.u32 2147483647, %v184
    %v217 = vand.u32 2147483647, %v185
    %v218 = vand.u32 2147483647, %v186
    %v219 = vand.u32 2147483647, %v187
    %v220 = vand.u32 2147483647, %v188
    %v221 = vand.u32 2147483647, %v189
    %v222 = vand.u32 2147483647, %v190
    %v223 = vand.u32 2147483647, %v191
    %v224 = vand.u32 2147483647, %v192
    %v225 = vand.u32 2147483647, %v193
    %v226 = vand.u32 2147483647, %v194
    %v227 = vand.u32 2147483647, %v195
    %v228 = vand.u32 2147483647, %v196
    %v229 = vand.u32 2147483647, %v197
    %v230 = vand.u32 2147483647, %v198
    %v231 = vand.u32 2147483647, %v199
    %v232 = vand.u32 2147483647, %v200
    %v233 = vand.u32 2147483647, %v201
    %v234 = vand.u32 2147483647, %v202
    %v235 = vand.u32 2147483647, %v203
    %v236 = vand.u32 2147483647, %v204
    %v237 = vand.u32 2147483647, %v205
    %v238 = vand.u32 2147483647, %v206
    %v239 = vand.u32 2147483647, %v207
    %v240 = vand.u32 2147483647, %v208
    %v241 = vand.u32 2147483647, %v209
    %v242 = vand.u32 2147483647, %v210
    %v243 = vand.u32 2147483647, %v211
    %v244 = vand.u32 2147483647, %v212
    %v245 = vand.u32 2147483647, %v213
    %v246 = vand.u32 2147483647, %v214
    %247 = vadd.xlane.f32.xlu0 %v215
    %v248 = vpop.xlane.xlu0 %247
    %249 = vadd.xlane.f32.xlu0 %v216
    %v250 = vpop.xlane.xlu0 %249
    %251 = vadd.xlane.f32.xlu0 %v217
    %v252 = vpop.xlane.xlu0 %251
    %253 = vadd.xlane.f32.xlu0 %v218
    %v254 = vpop.xlane.xlu0 %253
    %255 = vadd.xlane.f32.xlu0 %v219
    %v256 = vpop.xlane.xlu0 %255
    %257 = vadd.xlane.f32.xlu0 %v220
    %v258 = vpop.xlane.xlu0 %257
    %259 = vadd.xlane.f32.xlu0 %v221
    %v260 = vpop.xlane.xlu0 %259
    %261 = vadd.xlane.f32.xlu0 %v222
    %v262 = vpop.xlane.xlu0 %261
    %263 = vadd.xlane.f32.xlu0 %v223
    %v264 = vpop.xlane.xlu0 %263
    %265 = vadd.xlane.f32.xlu0 %v224
    %v266 = vpop.xlane.xlu0 %265
    %267 = vadd.xlane.f32.xlu0 %v225
    %v268 = vpop.xlane.xlu0 %267
    %269 = vadd.xlane.f32.xlu0 %v226
    %v270 = vpop.xlane.xlu0 %269
    %271 = vadd.xlane.f32.xlu0 %v227
    %v272 = vpop.xlane.xlu0 %271
    %273 = vadd.xlane.f32.xlu0 %v228
    %v274 = vpop.xlane.xlu0 %273
    %275 = vadd.xlane.f32.xlu0 %v229
    %v276 = vpop.xlane.xlu0 %275
    %277 = vadd.xlane.f32.xlu0 %v230
    %v278 = vpop.xlane.xlu0 %277
    %279 = vadd.xlane.f32.xlu0 %v231
    %v280 = vpop.xlane.xlu0 %279
    %281 = vadd.xlane.f32.xlu0 %v232
    %v282 = vpop.xlane.xlu0 %281
    %283 = vadd.xlane.f32.xlu0 %v233
    %v284 = vpop.xlane.xlu0 %283
    %285 = vadd.xlane.f32.xlu0 %v234
    %v286 = vpop.xlane.xlu0 %285
    %287 = vadd.xlane.f32.xlu0 %v235
    %v288 = vpop.xlane.xlu0 %287
    %289 = vadd.xlane.f32.xlu0 %v236
    %v290 = vpop.xlane.xlu0 %289
    %291 = vadd.xlane.f32.xlu0 %v237
    %v292 = vpop.xlane.xlu0 %291
    %293 = vadd.xlane.f32.xlu0 %v238
    %v294 = vpop.xlane.xlu0 %293
    %295 = vadd.xlane.f32.xlu0 %v239
    %v296 = vpop.xlane.xlu0 %295
    %297 = vadd.xlane.f32.xlu0 %v240
    %v298 = vpop.xlane.xlu0 %297
    %299 = vadd.xlane.f32.xlu0 %v241
    %v300 = vpop.xlane.xlu0 %299
    %301 = vadd.xlane.f32.xlu0 %v242
    %v302 = vpop.xlane.xlu0 %301
    %303 = vadd.xlane.f32.xlu0 %v243
    %v304 = vpop.xlane.xlu0 %303
    %305 = vadd.xlane.f32.xlu0 %v244
    %v306 = vpop.xlane.xlu0 %305
    %307 = vadd.xlane.f32.xlu0 %v245
    %v308 = vpop.xlane.xlu0 %307
    %309 = vadd.xlane.f32.xlu0 %v246
    %v310 = vpop.xlane.xlu0 %309
    %v311 = vsub.f32 12.0, %v248
    %v312 = vsub.f32 12.0, %v250
    %v313 = vsub.f32 12.0, %v252
    %v314 = vsub.f32 12.0, %v254
    %v315 = vsub.f32 12.0, %v256
    %v316 = vsub.f32 12.0, %v258
    %v317 = vsub.f32 12.0, %v260
    %v318 = vsub.f32 12.0, %v262
    %v319 = vsub.f32 12.0, %v264
    %v320 = vsub.f32 12.0, %v266
    %v321 = vsub.f32 12.0, %v268
    %v322 = vsub.f32 12.0, %v270
    %v323 = vsub.f32 12.0, %v272
    %v324 = vsub.f32 12.0, %v274
    %v325 = vsub.f32 12.0, %v276
    %v326 = vsub.f32 12.0, %v278
    %v327 = vsub.f32 12.0, %v280
    %v328 = vsub.f32 12.0, %v282
    %v329 = vsub.f32 12.0, %v284
    %v330 = vsub.f32 12.0, %v286
    %v331 = vsub.f32 12.0, %v288
    %v332 = vsub.f32 12.0, %v290
    %v333 = vsub.f32 12.0, %v292
    %v334 = vsub.f32 12.0, %v294
    %v335 = vsub.f32 12.0, %v296
    %v336 = vsub.f32 12.0, %v298
    %v337 = vsub.f32 12.0, %v300
    %v338 = vsub.f32 12.0, %v302
    %v339 = vsub.f32 12.0, %v304
    %v340 = vsub.f32 12.0, %v306
    %v341 = vsub.f32 12.0, %v308
    %v342 = vsub.f32 12.0, %v310
    %vm343 = vcmask 7168
    %344 = vst.msk [vmem:[%s3] sm:$0xff] %vm343, %v311
    %345 = vst.msk [vmem:[%s3 + $0x8] sm:$0xff] %vm343, %v312
    %346 = vst.msk [vmem:[%s3 + $0x10] sm:$0xff] %vm343, %v313
    %347 = vst.msk [vmem:[%s3 + $0x18] sm:$0xff] %vm343, %v314
    %348 = vst.msk [vmem:[%s3 + $0x20] sm:$0xff] %vm343, %v315
    %349 = vst.msk [vmem:[%s3 + $0x28] sm:$0xff] %vm343, %v316
    %350 = vst.msk [vmem:[%s3 + $0x30] sm:$0xff] %vm343, %v317
    %351 = vst.msk [vmem:[%s3 + $0x38] sm:$0xff] %vm343, %v318
    %352 = vst.msk [vmem:[%s3 + $0x40] sm:$0xff] %vm343, %v319
    %353 = vst.msk [vmem:[%s3 + $0x48] sm:$0xff] %vm343, %v320
    %354 = vst.msk [vmem:[%s3 + $0x50] sm:$0xff] %vm343, %v321
    %355 = vst.msk [vmem:[%s3 + $0x58] sm:$0xff] %vm343, %v322
    %356 = vst.msk [vmem:[%s3 + $0x60] sm:$0xff] %vm343, %v323
    %357 = vst.msk [vmem:[%s3 + $0x68] sm:$0xff] %vm343, %v324
    %358 = vst.msk [vmem:[%s3 + $0x70] sm:$0xff] %vm343, %v325
    %359 = vst.msk [vmem:[%s3 + $0x78] sm:$0xff] %vm343, %v326
    %360 = vst.msk [vmem:[%s3 + $0x80] sm:$0xff] %vm343, %v327
    %361 = vst.msk [vmem:[%s3 + $0x88] sm:$0xff] %vm343, %v328
    %362 = vst.msk [vmem:[%s3 + $0x90] sm:$0xff] %vm343, %v329
    %363 = vst.msk [vmem:[%s3 + $0x98] sm:$0xff] %vm343, %v330
    %364 = vst.msk [vmem:[%s3 + $0xa0] sm:$0xff] %vm343, %v331
    %365 = vst.msk [vmem:[%s3 + $0xa8] sm:$0xff] %vm343, %v332
    %366 = vst.msk [vmem:[%s3 + $0xb0] sm:$0xff] %vm343, %v333
    %367 = vst.msk [vmem:[%s3 + $0xb8] sm:$0xff] %vm343, %v334
    %368 = vst.msk [vmem:[%s3 + $0xc0] sm:$0xff] %vm343, %v335
    %369 = vst.msk [vmem:[%s3 + $0xc8] sm:$0xff] %vm343, %v336
    %370 = vst.msk [vmem:[%s3 + $0xd0] sm:$0xff] %vm343, %v337
    %371 = vst.msk [vmem:[%s3 + $0xd8] sm:$0xff] %vm343, %v338
    %372 = vst.msk [vmem:[%s3 + $0xe0] sm:$0xff] %vm343, %v339
    %373 = vst.msk [vmem:[%s3 + $0xe8] sm:$0xff] %vm343, %v340
    %374 = vst.msk [vmem:[%s3 + $0xf0] sm:$0xff] %vm343, %v341
    %375 = vst.msk [vmem:[%s3 + $0xf8] sm:$0xff] %vm343, %v342
    // Predicated region
    $region26: #{tpu_custom_call.1} parent=1 // pred_check
      _
    $region27: #{tpu_custom_call.1} parent=1 // pred_check_branch
      %377 = sbr.rel (0) target = $region29
    $region28: #{tpu_custom_call.1} parent=1 // pred_region
      _
    $region29: #{tpu_custom_call.1} parent=1 // pred_fallthru
      _
    // Predicated region
    $region30: #{tpu_custom_call.1} parent=1 // pred_check
      _
    $region31: #{tpu_custom_call.1} parent=1 // pred_check_branch
      %379 = sbr.rel (0) target = $region33
    $region32: #{tpu_custom_call.1} parent=1 // pred_region
      _
    $region33: #{tpu_custom_call.1} parent=1 // pred_fallthru
      _
    %380 = vsyncpa [#allocation3], 1
    %381 = vsyncpa [#allocation5], 1

</llo_original>
